<compile_context>
chip_gen: v7x
topology: tpu7x:2x2x1
jax: 0.10.0
libtpu: 0.0.40
codegen_flags: <defaults>
</compile_context>

<pallas_src>
import functools

import jax
import jax.numpy as jnp
from jax.experimental import pallas as pl
from jax.experimental.pallas import tpu as pltpu

LANE = 128


def linear_kernel(xT_ref, w_ref, b_ref, oT_ref):
    # xT_ref: (K, SB, 128) f32 VMEM  -- batch packed on sublanes+lanes
    # w_ref : (N, K)       f32 SMEM  -- scalar reads
    # b_ref : (N,)         f32 SMEM  -- scalar reads
    # oT_ref: (N, SB, 128) f32 VMEM  -- full-slab, unmasked stores
    n_out, k_in = w_ref.shape
    for n in range(n_out):                       # static unroll: N = 2
        acc = xT_ref[0] * w_ref[n, 0]            # (SB,128) slab * SMEM scalar
        for k in range(1, k_in):                 # static unroll: K = 3
            acc = acc + xT_ref[k] * w_ref[n, k]  # pure VPU scalar*slab FMA
        oT_ref[n] = acc + b_ref[n]


@functools.partial(jax.jit, static_argnames=("block_b",))
def simple_model_forward(x, weight, bias, *, block_b=256 * 1024):
    """y = x @ weight.T + bias, computed lane/sublane-dense as (W @ x^T)^T + b."""
    B, K = x.shape
    N, K2 = weight.shape
    assert K == K2 and bias.shape == (N,)

    # --- batch tiling: pack batch onto (sublanes, lanes) ------------------
    sb_full = max(block_b // LANE, 8)        # sublanes per tile, multiple of 8
    S = pl.cdiv(B, LANE)                     # total sublane rows needed
    if S <= sb_full:
        SB = S                               # single block == full array dim
        S_pad = S
    else:
        SB = sb_full                         # multiple of 8 -> clean tiling
        S_pad = pl.cdiv(S, SB) * SB
    Bp = S_pad * LANE

    # Layout plumbing (kept under this jit so XLA fuses it where possible).
    xT = x.T                                 # (K, B): batch on the fast axis
    if Bp != B:
        xT = jnp.pad(xT, ((0, 0), (0, Bp - B)))
    xT = xT.reshape(K, S_pad, LANE)          # free, contiguous view

    grid = (S_pad // SB,)

    outT = pl.pallas_call(
        linear_kernel,
        out_shape=jax.ShapeDtypeStruct((N, S_pad, LANE), x.dtype),
        grid=grid,
        in_specs=[
            pl.BlockSpec((K, SB, LANE), lambda i: (0, i, 0)),        # x^T batch tile (VMEM)
            pl.BlockSpec(memory_space=pltpu.MemorySpace.SMEM),       # weight, resident scalars
            pl.BlockSpec(memory_space=pltpu.MemorySpace.SMEM),       # bias, resident scalars
        ],
        out_specs=pl.BlockSpec((N, SB, LANE), lambda i: (0, i, 0)),
        compiler_params=pltpu.CompilerParams(
            dimension_semantics=("parallel",),       # independent batch tiles
            vmem_limit_bytes=32 * 1024 * 1024,       # headroom for ~10 MB of buffers
        ),
    )(xT, weight, bias)

    # (N, S_pad, 128) -> (N, Bp) -> drop pad -> (B, N)
    return outT.reshape(N, Bp)[:, :B].T


if __name__ == "__main__":
    key = jax.random.PRNGKey(0)
    k_x, k_w, k_b = jax.random.split(key, 3)

    # Deterministic parameters matching torch.randn(2, 3) / torch.randn(2)
    # (values won't be bit-identical to torch's RNG, only shape/dtype parity).
    weight = jax.random.normal(k_w, (2, 3), dtype=jnp.float32)
    bias = jax.random.normal(k_b, (2,), dtype=jnp.float32)

    # Small input batch consistent with the forward: last dim must be 3.
    x = jax.random.normal(k_x, (8, 3), dtype=jnp.float32)

    out = simple_model_forward(x, weight, bias)
    out = jax.block_until_ready(out)

    # Pure-JAX reference check
    ref = jnp.matmul(x, weight.T) + bias
    assert out.shape == (8, 2)
    assert jnp.allclose(out, ref, atol=1e-5, rtol=1e-5)

    print("KERNEL_OK")
</pallas_src>

<mosaic_0001>
module attributes {stable_mosaic.version = 11 : i64} {
  func.func @linear_kernel(%arg0: i32, %arg1: memref<3x1x128xf32, #tpu.memory_space<vmem>>, %arg2: memref<2x3xf32, #tpu.memory_space<smem>>, %arg3: memref<2xf32, #tpu.memory_space<smem>>, %arg4: memref<2x1x128xf32, #tpu.memory_space<vmem>>) attributes {dimension_semantics = [#tpu.dimension_semantics<parallel>], iteration_bounds = array<i64: 1>, scalar_prefetch = 0 : i64, scratch_operands = 0 : i64, tpu.core_type = #tpu.core_type<tc>, window_params = [{transform_indices = @transform_0, window_bounds = array<i64: 3, 1, 128>}, {transform_indices = @transform_1, window_bounds = array<i64: 2, 3>}, {transform_indices = @transform_2, window_bounds = array<i64: 2>}, {transform_indices = @transform_3, window_bounds = array<i64: 2, 1, 128>}]} {
    %c0 = arith.constant 0 : index
    %c0_0 = arith.constant 0 : index
    %c0_1 = arith.constant 0 : index
    %0 = vector.load %arg1[%c0, %c0_0, %c0_1] : memref<3x1x128xf32, #tpu.memory_space<vmem>>, vector<1x1x128xf32>
    %1 = vector.shape_cast %0 : vector<1x1x128xf32> to vector<1x128xf32>
    %c0_2 = arith.constant 0 : index
    %c0_3 = arith.constant 0 : index
    %2 = memref.load %arg2[%c0_2, %c0_3] : memref<2x3xf32, #tpu.memory_space<smem>>
    %3 = vector.broadcast %2 : f32 to vector<1x128xf32>
    %4 = arith.mulf %1, %3 : vector<1x128xf32>
    %c1 = arith.constant 1 : index
    %c0_4 = arith.constant 0 : index
    %c0_5 = arith.constant 0 : index
    %5 = vector.load %arg1[%c1, %c0_4, %c0_5] : memref<3x1x128xf32, #tpu.memory_space<vmem>>, vector<1x1x128xf32>
    %6 = vector.shape_cast %5 : vector<1x1x128xf32> to vector<1x128xf32>
    %c0_6 = arith.constant 0 : index
    %c1_7 = arith.constant 1 : index
    %7 = memref.load %arg2[%c0_6, %c1_7] : memref<2x3xf32, #tpu.memory_space<smem>>
    %8 = vector.broadcast %7 : f32 to vector<1x128xf32>
    %9 = arith.mulf %6, %8 : vector<1x128xf32>
    %10 = arith.addf %4, %9 : vector<1x128xf32>
    %c2 = arith.constant 2 : index
    %c0_8 = arith.constant 0 : index
    %c0_9 = arith.constant 0 : index
    %11 = vector.load %arg1[%c2, %c0_8, %c0_9] : memref<3x1x128xf32, #tpu.memory_space<vmem>>, vector<1x1x128xf32>
    %12 = vector.shape_cast %11 : vector<1x1x128xf32> to vector<1x128xf32>
    %c0_10 = arith.constant 0 : index
    %c2_11 = arith.constant 2 : index
    %13 = memref.load %arg2[%c0_10, %c2_11] : memref<2x3xf32, #tpu.memory_space<smem>>
    %14 = vector.broadcast %13 : f32 to vector<1x128xf32>
    %15 = arith.mulf %12, %14 : vector<1x128xf32>
    %16 = arith.addf %10, %15 : vector<1x128xf32>
    %c0_12 = arith.constant 0 : index
    %17 = memref.load %arg3[%c0_12] : memref<2xf32, #tpu.memory_space<smem>>
    %18 = vector.broadcast %17 : f32 to vector<1x128xf32>
    %19 = arith.addf %16, %18 : vector<1x128xf32>
    %c0_13 = arith.constant 0 : index
    %c0_14 = arith.constant 0 : index
    %c0_15 = arith.constant 0 : index
    %20 = vector.load %arg4[%c0_13, %c0_14, %c0_15] : memref<2x1x128xf32, #tpu.memory_space<vmem>>, vector<1x1x128xf32>
    %21 = vector.shape_cast %20 : vector<1x1x128xf32> to vector<1x128xf32>
    %22 = vector.shape_cast %19 : vector<1x128xf32> to vector<1x1x128xf32>
    tpu.vector_store %arg4[%c0_13, %c0_14, %c0_15], %22 {strides = array<i32>} : memref<2x1x128xf32, #tpu.memory_space<vmem>>, vector<1x1x128xf32>,
    %c0_16 = arith.constant 0 : index
    %c0_17 = arith.constant 0 : index
    %c0_18 = arith.constant 0 : index
    %23 = vector.load %arg1[%c0_16, %c0_17, %c0_18] : memref<3x1x128xf32, #tpu.memory_space<vmem>>, vector<1x1x128xf32>
    %24 = vector.shape_cast %23 : vector<1x1x128xf32> to vector<1x128xf32>
    %c1_19 = arith.constant 1 : index
    %c0_20 = arith.constant 0 : index
    %25 = memref.load %arg2[%c1_19, %c0_20] : memref<2x3xf32, #tpu.memory_space<smem>>
    %26 = vector.broadcast %25 : f32 to vector<1x128xf32>
    %27 = arith.mulf %24, %26 : vector<1x128xf32>
    %c1_21 = arith.constant 1 : index
    %c0_22 = arith.constant 0 : index
    %c0_23 = arith.constant 0 : index
    %28 = vector.load %arg1[%c1_21, %c0_22, %c0_23] : memref<3x1x128xf32, #tpu.memory_space<vmem>>, vector<1x1x128xf32>
    %29 = vector.shape_cast %28 : vector<1x1x128xf32> to vector<1x128xf32>
    %c1_24 = arith.constant 1 : index
    %c1_25 = arith.constant 1 : index
    %30 = memref.load %arg2[%c1_24, %c1_25] : memref<2x3xf32, #tpu.memory_space<smem>>
    %31 = vector.broadcast %30 : f32 to vector<1x128xf32>
    %32 = arith.mulf %29, %31 : vector<1x128xf32>
    %33 = arith.addf %27, %32 : vector<1x128xf32>
    %c2_26 = arith.constant 2 : index
    %c0_27 = arith.constant 0 : index
    %c0_28 = arith.constant 0 : index
    %34 = vector.load %arg1[%c2_26, %c0_27, %c0_28] : memref<3x1x128xf32, #tpu.memory_space<vmem>>, vector<1x1x128xf32>
    %35 = vector.shape_cast %34 : vector<1x1x128xf32> to vector<1x128xf32>
    %c1_29 = arith.constant 1 : index
    %c2_30 = arith.constant 2 : index
    %36 = memref.load %arg2[%c1_29, %c2_30] : memref<2x3xf32, #tpu.memory_space<smem>>
    %37 = vector.broadcast %36 : f32 to vector<1x128xf32>
    %38 = arith.mulf %35, %37 : vector<1x128xf32>
    %39 = arith.addf %33, %38 : vector<1x128xf32>
    %c1_31 = arith.constant 1 : index
    %40 = memref.load %arg3[%c1_31] : memref<2xf32, #tpu.memory_space<smem>>
    %41 = vector.broadcast %40 : f32 to vector<1x128xf32>
    %42 = arith.addf %39, %41 : vector<1x128xf32>
    %c1_32 = arith.constant 1 : index
    %c0_33 = arith.constant 0 : index
    %c0_34 = arith.constant 0 : index
    %43 = vector.load %arg4[%c1_32, %c0_33, %c0_34] : memref<2x1x128xf32, #tpu.memory_space<vmem>>, vector<1x1x128xf32>
    %44 = vector.shape_cast %43 : vector<1x1x128xf32> to vector<1x128xf32>
    %45 = vector.shape_cast %42 : vector<1x128xf32> to vector<1x1x128xf32>
    tpu.vector_store %arg4[%c1_32, %c0_33, %c0_34], %45 {strides = array<i32>} : memref<2x1x128xf32, #tpu.memory_space<vmem>>, vector<1x1x128xf32>,
    return
  }
  func.func @transform_0(%arg0: i32) -> (i32, i32, i32) {
    %c0_i32 = arith.constant 0 : i32
    %c0_i32_0 = arith.constant 0 : i32
    %c0_i32_1 = arith.constant 0 : i32
    return %c0_i32, %arg0, %c0_i32_0 : i32, i32, i32
  }
  func.func @transform_1(%arg0: i32) -> (i32, i32) {
    %c0_i32 = arith.constant 0 : i32
    %c0_i32_0 = arith.constant 0 : i32
    %c0_i32_1 = arith.constant 0 : i32
    return %c0_i32, %c0_i32_0 : i32, i32
  }
  func.func @transform_2(%arg0: i32) -> i32 {
    %c0_i32 = arith.constant 0 : i32
    %c0_i32_0 = arith.constant 0 : i32
    return %c0_i32 : i32
  }
  func.func @transform_3(%arg0: i32) -> (i32, i32, i32) {
    %c0_i32 = arith.constant 0 : i32
    %c0_i32_0 = arith.constant 0 : i32
    %c0_i32_1 = arith.constant 0 : i32
    return %c0_i32, %arg0, %c0_i32_0 : i32, i32, i32
  }
}

</mosaic_0001>

<llo_original>
// kernel: simple_model_forward.1
$region0: #{simple_model_forward.1}
  #allocation0 [shape = 'u32[]', space=smem, size = 0x4, offset = 0x4, fixed_abs, tag = 'smem constant byte address 0x4 - core index']
  #allocation1 [shape = 'u32[144,128]{1,0:T(1,128)}', space=vmem, size = 0x12000, scoped, tag = 'internal scratch']
  %s0 = inlined_call_operand.vmem [shape: f32[3,1,128], index: 0, kind: input, shape index: {}]
  %s1 = inlined_call_operand.vmem [shape: f32[2,3], index: 1, kind: input, shape index: {}]
  %s2 = inlined_call_operand.vmem [shape: f32[2], index: 2, kind: input, shape index: {}]
  %s3 = inlined_call_operand.vmem [shape: f32[2,1,128], index: 3, kind: output, shape index: {}]
  %s4 = sld [smem:[#allocation0]]
  $region30: #{simple_model_forward.1} parent=0
    _
  %s6 = ssub.s32 1, %s4
  %s7 = scalar_select 0, %s6, %s4
  $region1: #{simple_model_forward.1} parent=0
    #allocation2 [shape = 'u8[1024]{0}', space=smem, size = 0x400, scoped, tag = 'input window, operand 1, single buffered']
    #allocation3 [shape = 's32[1]{0}', space=sflag, size = 0x4, scoped, tag = 'scoped memory for simple_model_forward.1']
    #allocation4 [shape = 'u8[512]{0}', space=smem, size = 0x200, scoped, tag = 'input window, operand 2, single buffered']
    #allocation5 [shape = 's32[1]{0}', space=sflag, size = 0x4, scoped, tag = 'scoped memory for simple_model_forward.1']
    %8 = vsyncpa [#allocation3], 0
    %9 = vsyncpa [#allocation5], 0
    // Predicated region
    $region2: #{simple_model_forward.1} parent=1 // pred_check
      _
    $region3: #{simple_model_forward.1} parent=1 // pred_check_branch
      %11 = sbr.rel (0) target = $region5
    $region4: #{simple_model_forward.1} parent=1 // pred_region
      _
    $region5: #{simple_model_forward.1} parent=1 // pred_fallthru
      _
    // Predicated region
    $region6: #{simple_model_forward.1} parent=1 // pred_check
      _
    $region7: #{simple_model_forward.1} parent=1 // pred_check_branch
      %13 = sbr.rel (0) target = $region9
    $region8: #{simple_model_forward.1} parent=1 // pred_region
      %s15 = ssub.s32 32, 32
      %16 = vsyncadd [#allocation3], %s15
      %s18 = sshll.u32 %s1, 4
      %s19 = int_to_ptr.vmem [resolvable:$true] %s18
      %21 = dma.vmem_to_smem %s19, 32, [#allocation2], [#allocation3]
    $region9: #{simple_model_forward.1} parent=1 // pred_fallthru
      _
    // Predicated region
    $region10: #{simple_model_forward.1} parent=1 // pred_check
      _
    $region11: #{simple_model_forward.1} parent=1 // pred_check_branch
      %23 = sbr.rel (0) target = $region13
    $region12: #{simple_model_forward.1} parent=1 // pred_region
      %s25 = ssub.s32 16, 16
      %26 = vsyncadd [#allocation5], %s25
      %s28 = sshll.u32 %s2, 4
      %s29 = int_to_ptr.vmem [resolvable:$true] %s28
      %31 = dma.vmem_to_smem %s29, 16, [#allocation4], [#allocation5]
    $region13: #{simple_model_forward.1} parent=1 // pred_fallthru
      _
    // Predicated region
    $region14: #{simple_model_forward.1} parent=1 // pred_check
      _
    $region15: #{simple_model_forward.1} parent=1 // pred_check_branch
      %33 = sbr.rel (0) target = $region17
    $region16: #{simple_model_forward.1} parent=1 // pred_region
      %34 = dma.done [#allocation3], 32
    $region17: #{simple_model_forward.1} parent=1 // pred_fallthru
      _
    // Predicated region
    $region18: #{simple_model_forward.1} parent=1 // pred_check
      _
    $region19: #{simple_model_forward.1} parent=1 // pred_check_branch
      %36 = sbr.rel (0) target = $region21
    $region20: #{simple_model_forward.1} parent=1 // pred_region
      %37 = dma.done [#allocation5], 16
    $region21: #{simple_model_forward.1} parent=1 // pred_fallthru
      _
    %38 = sfence
    %v39 = vld [vmem:[%s0] sm:$0x1]
    %s40 = sld [smem:[#allocation2]]
    %v41 = vstv %s40
    %v42 = vmul.f32 %v39, %v41
    %s43 = scalar_lea.vmem %s0, 1
    %v44 = vld [vmem:[%s43] sm:$0x1]
    %s45 = sld [smem:[#allocation2 + $0x1]]
    %v46 = vstv %s45
    %v47 = vmul.f32 %v44, %v46
    %v48 = vadd.f32 %v42, %v47
    %s49 = scalar_lea.vmem %s0, 2
    %v50 = vld [vmem:[%s49] sm:$0x1]
    %s51 = sld [smem:[#allocation2 + $0x2]]
    %v52 = vstv %s51
    %v53 = vmul.f32 %v50, %v52
    %v54 = vadd.f32 %v48, %v53
    %s55 = sld [smem:[#allocation4]]
    %v56 = vstv %s55
    %v57 = vadd.f32 %v54, %v56
    %58 = vst [vmem:[%s3] sm:$0x1] %v57
    %v59 = vld [vmem:[%s0] sm:$0x1]
    %s60 = sld [smem:[#allocation2 + $0x80]]
    %v61 = vstv %s60
    %v62 = vmul.f32 %v59, %v61
    %v63 = vld [vmem:[%s43] sm:$0x1]
    %s64 = sld [smem:[#allocation2 + $0x81]]
    %v65 = vstv %s64
    %v66 = vmul.f32 %v63, %v65
    %v67 = vadd.f32 %v62, %v66
    %v68 = vld [vmem:[%s49] sm:$0x1]
    %s69 = sld [smem:[#allocation2 + $0x82]]
    %v70 = vstv %s69
    %v71 = vmul.f32 %v68, %v70
    %v72 = vadd.f32 %v67, %v71
    %s73 = sld [smem:[#allocation4 + $0x1]]
    %v74 = vstv %s73
    %v75 = vadd.f32 %v72, %v74
    %s76 = scalar_lea.vmem %s3, 1
    %77 = vst [vmem:[%s76] sm:$0x1] %v75
    // Predicated region
    $region22: #{simple_model_forward.1} parent=1 // pred_check
      _
    $region23: #{simple_model_forward.1} parent=1 // pred_check_branch
      %79 = sbr.rel (0) target = $region25
    $region24: #{simple_model_forward.1} parent=1 // pred_region
      _
    $region25: #{simple_model_forward.1} parent=1 // pred_fallthru
      _
    // Predicated region
    $region26: #{simple_model_forward.1} parent=1 // pred_check
      _
    $region27: #{simple_model_forward.1} parent=1 // pred_check_branch
      %81 = sbr.rel (0) target = $region29
    $region28: #{simple_model_forward.1} parent=1 // pred_region
      _
    $region29: #{simple_model_forward.1} parent=1 // pred_fallthru
      _
    %82 = vsyncpa [#allocation3], 1
    %83 = vsyncpa [#allocation5], 1

</llo_original>
